<compile_context>
chip_gen: v7x
topology: tpu7x:2x2x1
jax: 0.10.0
libtpu: 0.0.40
codegen_flags: <defaults>
</compile_context>

<pallas_src>
import functools

import jax
import jax.numpy as jnp
from jax.experimental import pallas as pl
from jax.experimental.pallas import tpu as pltpu

HIDDEN = 32
BN_EPS = 1e-5


def _round_up(n: int, m: int) -> int:
    return ((n + m - 1) // m) * m


def _choose_tiles(batch: int, feats: int) -> tuple[int, int]:
    """Pick (batch_tile, row_chunk) from HBM-amortisation + padded-VMEM math."""
    # Target ~2 MiB of *real* HBM bytes per x tile (tb * F * 4).
    target_bytes = 2 * 1024 * 1024
    tb = _round_up(max(128, target_bytes // (feats * 4)), 128)
    # Lane-padded VMEM cost of an x tile row is max(F,128)*4 bytes; cap the
    # double-buffered x stream at ~36 MiB so the total fits v7x's 64 MiB.
    lanes = _round_up(feats, 128)
    x_budget = 36 * 1024 * 1024
    tb_cap = max(128, (x_budget // (2 * lanes * 4)) // 128 * 128)
    tb = min(tb, tb_cap)
    # Never use a tile (much) larger than the batch itself.
    tb = min(tb, _round_up(batch, 128))
    # Inner compute chunk keeps the lane-padded h intermediate ~1 MiB.
    chunk = min(tb, 2048)
    tb = _round_up(tb, chunk)
    return tb, chunk


def _risan_kernel(x_ref, w1_ref, bw_ref, f_ref, *, chunk: int):
    # Resident small operands (hoisted out of the chunk loop).
    w1 = w1_ref[...]          # (F, H)  fc_1 weight with BN folded in
    b1 = bw_ref[0:1, :]       # (1, H)  fc_1 bias with BN folded in
    w2 = bw_ref[1:2, :]       # (1, H)  second-layer weights as a row

    n_chunks = x_ref.shape[0] // chunk

    def body(c, carry):
        r = pl.multiple_of(c * chunk, chunk)
        xs = x_ref[pl.ds(r, chunk), :]                          # (chunk, F)
        h = jnp.dot(xs, w1, preferred_element_type=jnp.float32)  # (chunk, H)
        h = jnp.maximum(h + b1, 0.0)   # ReLU; Dropout1d is identity in eval.
        # (1, H) contracted with (chunk, H) over H -> (1, chunk).
        # Identical lowering to pl.dot(w2, h, trans_b=True): no relayout of
        # the large h operand, and the store is lane-dense.
        f = jax.lax.dot_general(
            w2, h,
            dimension_numbers=(((1,), (1,)), ((), ())),
            preferred_element_type=jnp.float32)
        f_ref[:, pl.ds(r, chunk)] = f
        return carry

    jax.lax.fori_loop(0, n_chunks, body, 0, unroll=True)


@jax.jit
def risan_forward(x, params):
    """Returns (f, softplus_rho) with shapes ((B, 1), (1,))."""
    B, F = x.shape
    w1, b1, gamma, beta, mean, var, w2, b2, rho = params

    # ---- Fold eval-mode BatchNorm1d into the first linear (host side). -----
    scale = gamma * jax.lax.rsqrt(var + BN_EPS)        # (1, H)
    w1f = w1 * scale                                   # (F, H)
    b1f = (b1 - mean) * scale + beta                   # (1, H)
    bw = jnp.concatenate([b1f, w2.reshape(1, HIDDEN)], axis=0)  # (2, H)

    # ---- Tiling: large 128-aligned batch tiles, no host-side padding. ------
    tb, chunk = _choose_tiles(B, F)
    grid = pl.cdiv(B, tb)
    out_lanes = grid * tb    # output is tiny; padding it costs ~nothing.

    # ---- VMEM budget (lane/sublane padded) + cost hint. ---------------------
    lanes_f = _round_up(F, 128)
    vmem_needed = (
        2 * tb * lanes_f * 4     # double-buffered x tile (lanes pad to 128)
        + 2 * 8 * tb * 4         # double-buffered (1, tb) output (sublane pad)
        + 8 * chunk * 128 * 4    # in-kernel h / temporaries (generous)
        + (1 << 20)              # resident weights + misc
    )
    vmem_limit = int(max(vmem_needed, 32 * 1024 * 1024))

    weight_bytes = (F * HIDDEN + 3 * HIDDEN + 1) * 4
    cost = pl.CostEstimate(
        flops=2 * B * F * HIDDEN + 2 * B * HIDDEN,
        transcendentals=0,
        bytes_accessed=B * F * 4 + B * 4 + weight_bytes)

    f_row = pl.pallas_call(
        functools.partial(_risan_kernel, chunk=chunk),
        out_shape=jax.ShapeDtypeStruct((1, out_lanes), jnp.float32),
        grid=(grid,),
        in_specs=[
            pl.BlockSpec((tb, F), lambda i: (i, 0)),        # x: streamed per tile
            pl.BlockSpec((F, HIDDEN), lambda i: (0, 0)),    # W1 (BN folded), resident
            pl.BlockSpec((2, HIDDEN), lambda i: (0, 0)),    # [b1; w2_row], resident
        ],
        out_specs=pl.BlockSpec((1, tb), lambda i: (0, i)),  # lane-dense f output
        compiler_params=pltpu.CompilerParams(
            dimension_semantics=("parallel",),              # TC sharding on v7x
            vmem_limit_bytes=vmem_limit),
        cost_estimate=cost,
    )(x, w1f, bw)

    # b2 applied outside the kernel; padded lanes (>= B) are discarded here.
    f = f_row[0, :B].reshape(B, 1) + b2.reshape(1, 1)
    sp = jax.nn.softplus(rho).reshape((1,))
    return f, sp


def init_params(key, num_features):
    """Deterministic parameter init mirroring the module's shapes."""
    k1, k2, k3, k4 = jax.random.split(key, 4)
    # fc_1: LazyLinear(32) -> W1 (F, 32), b1 (1, 32)
    bound1 = 1.0 / jnp.sqrt(num_features)
    w1 = jax.random.uniform(k1, (num_features, HIDDEN), jnp.float32, -bound1, bound1)
    b1 = jax.random.uniform(k2, (1, HIDDEN), jnp.float32, -bound1, bound1)
    # BatchNorm1d defaults: gamma=1, beta=0, running_mean=0, running_var=1
    gamma = jnp.ones((1, HIDDEN), jnp.float32)
    beta = jnp.zeros((1, HIDDEN), jnp.float32)
    mean = jnp.zeros((1, HIDDEN), jnp.float32)
    var = jnp.ones((1, HIDDEN), jnp.float32)
    # f: LazyLinear(1) -> W2 (32, 1), b2 (1, 1)
    bound2 = 1.0 / jnp.sqrt(HIDDEN)
    w2 = jax.random.uniform(k3, (HIDDEN, 1), jnp.float32, -bound2, bound2)
    b2 = jax.random.uniform(k4, (1, 1), jnp.float32, -bound2, bound2)
    # rho: nn.Parameter(torch.ones(1))
    rho = jnp.ones((1, 1), jnp.float32)
    return (w1, b1, gamma, beta, mean, var, w2, b2, rho)


def risan_forward_ref(x, params):
    """Pure-JAX reference for correctness checking (eval-mode forward)."""
    w1, b1, gamma, beta, mean, var, w2, b2, rho = params
    h = x @ w1 + b1
    h = (h - mean) / jnp.sqrt(var + BN_EPS) * gamma + beta
    h = jnp.maximum(h, 0.0)
    f = h @ w2 + b2
    return f, jax.nn.softplus(rho).reshape((1,))


if __name__ == "__main__":
    key = jax.random.PRNGKey(0)
    kx, kp, kx2 = jax.random.split(key, 3)

    # Small deterministic example consistent with the module's forward.
    batch, num_features = 8, 16
    x = jax.random.normal(kx, (batch, num_features), jnp.float32)
    params = init_params(kp, num_features)

    f, sp_rho = risan_forward(x, params)
    jax.block_until_ready((f, sp_rho))

    f_ref, sp_ref = risan_forward_ref(x, params)
    assert f.shape == (batch, 1) and sp_rho.shape == (1,)
    assert jnp.allclose(f, f_ref, atol=1e-5, rtol=1e-5)
    assert jnp.allclose(sp_rho, sp_ref, atol=1e-6, rtol=1e-6)

    # Second check: multi-tile grid with a partial (unpadded) last block,
    # exercising the large-tile / no-host-pad streaming path.
    batch2 = 70_000
    x2 = jax.random.normal(kx2, (batch2, num_features), jnp.float32)
    f2, _ = risan_forward(x2, params)
    jax.block_until_ready(f2)
    f2_ref, _ = risan_forward_ref(x2, params)
    assert f2.shape == (batch2, 1)
    assert jnp.allclose(f2, f2_ref, atol=1e-4, rtol=1e-4)

    print("KERNEL_OK")
</pallas_src>

<mosaic_0001>
module attributes {stable_mosaic.version = 11 : i64} {
  func.func @_risan_kernel(%arg0: i32, %arg1: memref<128x16xf32, #tpu.memory_space<vmem>>, %arg2: memref<16x32xf32, #tpu.memory_space<vmem>>, %arg3: memref<2x32xf32, #tpu.memory_space<vmem>>, %arg4: memref<1x128xf32, #tpu.memory_space<vmem>>) attributes {dimension_semantics = [#tpu.dimension_semantics<parallel>], iteration_bounds = array<i64: 1>, scalar_prefetch = 0 : i64, scratch_operands = 0 : i64, tpu.core_type = #tpu.core_type<tc>, window_params = [{transform_indices = @transform_0, window_bounds = array<i64: 128, 16>}, {pipeline_mode = #tpu.pipeline_mode<synchronous>, transform_indices = @transform_1, window_bounds = array<i64: 16, 32>}, {pipeline_mode = #tpu.pipeline_mode<synchronous>, transform_indices = @transform_2, window_bounds = array<i64: 2, 32>}, {transform_indices = @transform_3, window_bounds = array<i64: 1, 128>}]} {
    %c0 = arith.constant 0 : index
    %c0_0 = arith.constant 0 : index
    %0 = vector.load %arg2[%c0, %c0_0] : memref<16x32xf32, #tpu.memory_space<vmem>>, vector<16x32xf32>
    %c0_1 = arith.constant 0 : index
    %c0_2 = arith.constant 0 : index
    %1 = vector.load %arg3[%c0_1, %c0_2] : memref<2x32xf32, #tpu.memory_space<vmem>>, vector<1x32xf32>
    %c1 = arith.constant 1 : index
    %c0_3 = arith.constant 0 : index
    %2 = vector.load %arg3[%c1, %c0_3] : memref<2x32xf32, #tpu.memory_space<vmem>>, vector<1x32xf32>
    %c0_i32 = arith.constant 0 : i32
    %c128_i32 = arith.constant 128 : i32
    %3 = arith.muli %c0_i32, %c128_i32 : i32
    %4 = tpu.assume_multiple %3, 128 : i32
    %5 = arith.index_cast %4 : i32 to index
    %c0_4 = arith.constant 0 : index
    %6 = vector.load %arg1[%5, %c0_4] : memref<128x16xf32, #tpu.memory_space<vmem>>, vector<128x16xf32>
    %cst = arith.constant dense<0.000000e+00> : vector<128x32xf32>
    %7 = tpu.matmul %6, %0, %cst {dimension_numbers = #tpu.dot_dimension_numbers<[1], [0], [0], [1], [0, 0, 1, 1], [], []>} : vector<128x16xf32>, vector<16x32xf32>, vector<128x32xf32> -> vector<128x32xf32>
    %8 = vector.broadcast %1 : vector<1x32xf32> to vector<128x32xf32>
    %9 = arith.addf %7, %8 : vector<128x32xf32>
    %cst_5 = arith.constant 0.000000e+00 : f32
    %10 = vector.broadcast %cst_5 : f32 to vector<128x32xf32>
    %11 = arith.maximumf %9, %10 : vector<128x32xf32>
    %cst_6 = arith.constant dense<0.000000e+00> : vector<1x128xf32>
    %12 = tpu.matmul %2, %11, %cst_6 {dimension_numbers = #tpu.dot_dimension_numbers<[1], [1], [0], [0], [0, 0, 1, 0], [], []>} : vector<1x32xf32>, vector<128x32xf32>, vector<1x128xf32> -> vector<1x128xf32>
    %c0_7 = arith.constant 0 : index
    %13 = arith.index_cast %4 : i32 to index
    %14 = vector.load %arg4[%c0_7, %13] : memref<1x128xf32, #tpu.memory_space<vmem>>, vector<1x128xf32>
    tpu.vector_store %arg4[%c0_7, %13], %12 {strides = array<i32>} : memref<1x128xf32, #tpu.memory_space<vmem>>, vector<1x128xf32>,
    %c1_i32 = arith.constant 1 : i32
    return
  }
  func.func @transform_0(%arg0: i32) -> (i32, i32) {
    %c0_i32 = arith.constant 0 : i32
    %c0_i32_0 = arith.constant 0 : i32
    return %arg0, %c0_i32 : i32, i32
  }
  func.func @transform_1(%arg0: i32) -> (i32, i32) {
    %c0_i32 = arith.constant 0 : i32
    %c0_i32_0 = arith.constant 0 : i32
    %c0_i32_1 = arith.constant 0 : i32
    return %c0_i32, %c0_i32_0 : i32, i32
  }
  func.func @transform_2(%arg0: i32) -> (i32, i32) {
    %c0_i32 = arith.constant 0 : i32
    %c0_i32_0 = arith.constant 0 : i32
    %c0_i32_1 = arith.constant 0 : i32
    return %c0_i32, %c0_i32_0 : i32, i32
  }
  func.func @transform_3(%arg0: i32) -> (i32, i32) {
    %c0_i32 = arith.constant 0 : i32
    %c0_i32_0 = arith.constant 0 : i32
    return %c0_i32, %arg0 : i32, i32
  }
}

</mosaic_0001>

<llo_original>
// kernel: risan_forward.1
$region0: #{risan_forward.1}
  #allocation0 [shape = 'u32[]', space=smem, size = 0x4, offset = 0x4, fixed_abs, tag = 'smem constant byte address 0x4 - core index']
  #allocation1 [shape = 'u32[144,128]{1,0:T(1,128)}', space=vmem, size = 0x12000, scoped, tag = 'internal scratch']
  %s0 = inlined_call_operand.vmem [shape: f32[8,16], index: 0, kind: input, shape index: {}]
  %s1 = inlined_call_operand.vmem [shape: f32[16,32], index: 1, kind: input, shape index: {}]
  %s2 = inlined_call_operand.vmem [shape: f32[2,32], index: 2, kind: input, shape index: {}]
  %s3 = inlined_call_operand.vmem [shape: f32[1,128], index: 3, kind: output, shape index: {}]
  %s4 = sld [smem:[#allocation0]]
  $region22: #{risan_forward.1} parent=0
    _
  %s6 = ssub.s32 1, %s4
  %s7 = scalar_select 0, %s6, %s4
  // Predicated region
  $region2: #{risan_forward.1} parent=0 // pred_check
    _
  $region3: #{risan_forward.1} parent=0 // pred_check_branch
    %9 = sbr.rel (0) target = $region5
  $region4: #{risan_forward.1} parent=0 // pred_region
    _
  $region5: #{risan_forward.1} parent=0 // pred_fallthru
    _
  // Predicated region
  $region6: #{risan_forward.1} parent=0 // pred_check
    _
  $region7: #{risan_forward.1} parent=0 // pred_check_branch
    %11 = sbr.rel (0) target = $region9
  $region8: #{risan_forward.1} parent=0 // pred_region
    _
  $region9: #{risan_forward.1} parent=0 // pred_fallthru
    _
  // Predicated region
  $region10: #{risan_forward.1} parent=0 // pred_check
    _
  $region11: #{risan_forward.1} parent=0 // pred_check_branch
    %13 = sbr.rel (0) target = $region13
  $region12: #{risan_forward.1} parent=0 // pred_region
    _
  $region13: #{risan_forward.1} parent=0 // pred_fallthru
    _
  %v14 = vld [vmem:[%s1] sm:$0xff]
  %v15 = vld [vmem:[%s1 + $0x8] sm:$0xff]
  %v16 = vld [vmem:[%s2] sm:$0x1]
  %v17 = vld [vmem:[%s2 + $0x1] sm:$0x1]
  %v18 = vld [vmem:[%s0] sm:$0xff]
  %v19 = vld [vmem:[%s0 + $0x8] sm:$0xff]
  %v20 = vld [vmem:[%s0 + $0x10] sm:$0xff]
  %v21 = vld [vmem:[%s0 + $0x18] sm:$0xff]
  %v22 = vld [vmem:[%s0 + $0x20] sm:$0xff]
  %v23 = vld [vmem:[%s0 + $0x28] sm:$0xff]
  %v24 = vld [vmem:[%s0 + $0x30] sm:$0xff]
  %v25 = vld [vmem:[%s0 + $0x38] sm:$0xff]
  %v26 = vld [vmem:[%s0 + $0x40] sm:$0xff]
  %v27 = vld [vmem:[%s0 + $0x48] sm:$0xff]
  %v28 = vld [vmem:[%s0 + $0x50] sm:$0xff]
  %v29 = vld [vmem:[%s0 + $0x58] sm:$0xff]
  %v30 = vld [vmem:[%s0 + $0x60] sm:$0xff]
  %v31 = vld [vmem:[%s0 + $0x68] sm:$0xff]
  %v32 = vld [vmem:[%s0 + $0x70] sm:$0xff]
  %v33 = vld [vmem:[%s0 + $0x78] sm:$0xff]
  %v34 = vlaneseq
  %v35 = vshrl.u32 %v34, 7
  %v36 = vsub.s32 0, %v35
  %v37 = vrot.slane %v16, %v36
  %vm38 = vcmask 130048
  %v40 = vsel %vm38, %v18, 0
  %v43 = vsel %vm38, %v19, 0
  %v46 = vsel %vm38, %v20, 0
  %v49 = vsel %vm38, %v21, 0
  %v52 = vsel %vm38, %v22, 0
  %v55 = vsel %vm38, %v23, 0
  %v58 = vsel %vm38, %v24, 0
  %v61 = vsel %vm38, %v25, 0
  %v64 = vsel %vm38, %v26, 0
  %v67 = vsel %vm38, %v27, 0
  %v70 = vsel %vm38, %v28, 0
  %v73 = vsel %vm38, %v29, 0
  %v76 = vsel %vm38, %v30, 0
  %v79 = vsel %vm38, %v31, 0
  %v82 = vsel %vm38, %v32, 0
  %v85 = vsel %vm38, %v33, 0
  %87 = vmatprep.subr.mxu0 0.0
  %88 = vmatpush1.msra.mxu0 %v14
  %89 = vmatprep.subr.mxu0 0.0
  %90 = vmatpush1.msra.mxu0 %v15
  %91 = vmatprep.subr.mxu0 0.0
  %92 = vmatpush1.msra.mxu0 0.0
  %93 = vmatprep.subr.mxu0 0.0
  %94 = vmatpush1.msra.mxu0 0.0
  %95 = vmatprep.subr.mxu0 0.0
  %96 = vmatpush1.msra.mxu0 0.0
  %97 = vmatprep.subr.mxu0 0.0
  %98 = vmatpush1.msra.mxu0 0.0
  %99 = vmatprep.subr.mxu0 0.0
  %100 = vmatpush1.msra.mxu0 0.0
  %101 = vmatprep.subr.mxu0 0.0
  %102 = vmatpush1.msra.mxu0 0.0
  %103 = vmatprep.subr.mxu0 0.0
  %104 = vmatpush1.msra.mxu0 0.0
  %105 = vmatprep.subr.mxu0 0.0
  %106 = vmatpush1.msra.mxu0 0.0
  %107 = vmatprep.subr.mxu0 0.0
  %108 = vmatpush1.msra.mxu0 0.0
  %109 = vmatprep.subr.mxu0 0.0
  %110 = vmatpush1.msra.mxu0 0.0
  %111 = vmatprep.subr.mxu0 0.0
  %112 = vmatpush1.msra.mxu0 0.0
  %113 = vmatprep.subr.mxu0 0.0
  %114 = vmatpush1.msra.mxu0 0.0
  %115 = vmatprep.subr.mxu0 0.0
  %116 = vmatpush1.msra.mxu0 0.0
  %117 = vmatprep.subr.mxu0 0.0
  %118 = vmatpush1.msra.mxu0 0.0
  %119 = vmatprep.subr.mxu0 0.0
  %120 = vmatpush1.msra.mxu0 0.0
  %121 = vmatprep.subr.mxu0 0.0
  %122 = vmatpush1.msra.mxu0 0.0
  %123 = vmatprep.subr.mxu0 0.0
  %124 = vmatpush1.msra.mxu0 0.0
  %125 = vmatprep.subr.mxu0 0.0
  %126 = vmatpush1.msra.mxu0 0.0
  %127 = vmatprep.subr.mxu0 0.0
  %128 = vmatpush1.msra.mxu0 0.0
  %129 = vmatprep.subr.mxu0 0.0
  %130 = vmatpush1.msra.mxu0 0.0
  %131 = vmatprep.subr.mxu0 0.0
  %132 = vmatpush1.msra.mxu0 0.0
  %133 = vmatprep.subr.mxu0 0.0
  %134 = vmatpush1.msra.mxu0 0.0
  %135 = vmatprep.subr.mxu0 0.0
  %136 = vmatpush1.msra.mxu0 0.0
  %137 = vmatprep.subr.mxu0 0.0
  %138 = vmatpush1.msra.mxu0 0.0
  %139 = vmatprep.subr.mxu0 0.0
  %140 = vmatpush1.msra.mxu0 0.0
  %141 = vmatprep.subr.mxu0 0.0
  %142 = vmatpush1.msra.mxu0 0.0
  %143 = vmatprep.subr.mxu0 0.0
  %144 = vmatpush1.msra.mxu0 0.0
  %145 = vmatprep.subr.mxu0 0.0
  %146 = vmatpush1.msra.mxu0 0.0
  %147 = vmatprep.subr.mxu0 0.0
  %148 = vmatpush1.msra.mxu0 0.0
  %149 = vmatprep.subr.mxu0 0.0
  %150 = vmatpush1.msra.mxu0 0.0
  %151 = vmatprep.mubr.f32.mxu0 0.0
  %152 = vmatmul.mubr.f32.gmra.mrb[0].mxu0 %v40
  %v153 = vpop.f32.mrb[0].mxu0
  %v154 = vadd.f32 %v37, %v153
  %v155 = vpop.f32.mrb[0].mxu0
  %156 = vmatprep.mubr.f32.mxu0 0.0
  %157 = vmatmul.mubr.f32.gmra.mrb[0].mxu0 %v43
  %v158 = vpop.f32.mrb[0].mxu0
  %v159 = vadd.f32 %v37, %v158
  %v160 = vpop.f32.mrb[0].mxu0
  %161 = vmatprep.mubr.f32.mxu0 0.0
  %162 = vmatmul.mubr.f32.gmra.mrb[0].mxu0 %v46
  %v163 = vpop.f32.mrb[0].mxu0
  %v164 = vadd.f32 %v37, %v163
  %v165 = vpop.f32.mrb[0].mxu0
  %166 = vmatprep.mubr.f32.mxu0 0.0
  %167 = vmatmul.mubr.f32.gmra.mrb[0].mxu0 %v49
  %v168 = vpop.f32.mrb[0].mxu0
  %v169 = vadd.f32 %v37, %v168
  %v170 = vpop.f32.mrb[0].mxu0
  %171 = vmatprep.mubr.f32.mxu0 0.0
  %172 = vmatmul.mubr.f32.gmra.mrb[0].mxu0 %v52
  %v173 = vpop.f32.mrb[0].mxu0
  %v174 = vadd.f32 %v37, %v173
  %v175 = vpop.f32.mrb[0].mxu0
  %176 = vmatprep.mubr.f32.mxu0 0.0
  %177 = vmatmul.mubr.f32.gmra.mrb[0].mxu0 %v55
  %v178 = vpop.f32.mrb[0].mxu0
  %v179 = vadd.f32 %v37, %v178
  %v180 = vpop.f32.mrb[0].mxu0
  %181 = vmatprep.mubr.f32.mxu0 0.0
  %182 = vmatmul.mubr.f32.gmra.mrb[0].mxu0 %v58
  %v183 = vpop.f32.mrb[0].mxu0
  %v184 = vadd.f32 %v37, %v183
  %v185 = vpop.f32.mrb[0].mxu0
  %186 = vmatprep.mubr.f32.mxu0 0.0
  %187 = vmatmul.mubr.f32.gmra.mrb[0].mxu0 %v61
  %v188 = vpop.f32.mrb[0].mxu0
  %v189 = vadd.f32 %v37, %v188
  %v190 = vpop.f32.mrb[0].mxu0
  %191 = vmatprep.mubr.f32.mxu0 0.0
  %192 = vmatmul.mubr.f32.gmra.mrb[0].mxu0 %v64
  %v193 = vpop.f32.mrb[0].mxu0
  %v194 = vadd.f32 %v37, %v193
  %v195 = vpop.f32.mrb[0].mxu0
  %196 = vmatprep.mubr.f32.mxu0 0.0
  %197 = vmatmul.mubr.f32.gmra.mrb[0].mxu0 %v67
  %v198 = vpop.f32.mrb[0].mxu0
  %v199 = vadd.f32 %v37, %v198
  %v200 = vpop.f32.mrb[0].mxu0
  %201 = vmatprep.mubr.f32.mxu0 0.0
  %202 = vmatmul.mubr.f32.gmra.mrb[0].mxu0 %v70
  %v203 = vpop.f32.mrb[0].mxu0
  %v204 = vadd.f32 %v37, %v203
  %v205 = vpop.f32.mrb[0].mxu0
  %206 = vmatprep.mubr.f32.mxu0 0.0
  %207 = vmatmul.mubr.f32.gmra.mrb[0].mxu0 %v73
  %v208 = vpop.f32.mrb[0].mxu0
  %v209 = vadd.f32 %v37, %v208
  %v210 = vpop.f32.mrb[0].mxu0
  %211 = vmatprep.mubr.f32.mxu0 0.0
  %212 = vmatmul.mubr.f32.gmra.mrb[0].mxu0 %v76
  %v213 = vpop.f32.mrb[0].mxu0
  %v214 = vadd.f32 %v37, %v213
  %v215 = vpop.f32.mrb[0].mxu0
  %216 = vmatprep.mubr.f32.mxu0 0.0
  %217 = vmatmul.mubr.f32.gmra.mrb[0].mxu0 %v79
  %v218 = vpop.f32.mrb[0].mxu0
  %v219 = vadd.f32 %v37, %v218
  %v220 = vpop.f32.mrb[0].mxu0
  %221 = vmatprep.mubr.f32.mxu0 0.0
  %222 = vmatmul.mubr.f32.gmra.mrb[0].mxu0 %v82
  %v223 = vpop.f32.mrb[0].mxu0
  %v224 = vadd.f32 %v37, %v223
  %v225 = vpop.f32.mrb[0].mxu0
  %226 = vmatprep.mubr.f32.mxu0 0.0
  %227 = vmatmul.mubr.f32.gmra.mrb[0].mxu0 %v85
  %v228 = vpop.f32.mrb[0].mxu0
  %v229 = vadd.f32 %v37, %v228
  %v230 = vpop.f32.mrb[0].mxu0
  %231 = vdwg.mxu0
  %v232 = vmax.f32 %v154, 0.0
  %v233 = vmax.f32 %v159, 0.0
  %v234 = vmax.f32 %v164, 0.0
  %v235 = vmax.f32 %v169, 0.0
  %v236 = vmax.f32 %v174, 0.0
  %v237 = vmax.f32 %v179, 0.0
  %v238 = vmax.f32 %v184, 0.0
  %v239 = vmax.f32 %v189, 0.0
  %v240 = vmax.f32 %v194, 0.0
  %v241 = vmax.f32 %v199, 0.0
  %v242 = vmax.f32 %v204, 0.0
  %v243 = vmax.f32 %v209, 0.0
  %v244 = vmax.f32 %v214, 0.0
  %v245 = vmax.f32 %v219, 0.0
  %v246 = vmax.f32 %v224, 0.0
  %v247 = vmax.f32 %v229, 0.0
  %vm248 = vcmask 261120
  %v250 = vsel %vm248, %v17, 0
  %v253 = vsel %vm248, %v232, 0
  %v256 = vsel %vm248, %v233, 0
  %v259 = vsel %vm248, %v234, 0
  %v262 = vsel %vm248, %v235, 0
  %v265 = vsel %vm248, %v236, 0
  %v268 = vsel %vm248, %v237, 0
  %v271 = vsel %vm248, %v238, 0
  %v274 = vsel %vm248, %v239, 0
  %v277 = vsel %vm248, %v240, 0
  %v280 = vsel %vm248, %v241, 0
  %v283 = vsel %vm248, %v242, 0
  %v286 = vsel %vm248, %v243, 0
  %v289 = vsel %vm248, %v244, 0
  %v292 = vsel %vm248, %v245, 0
  %v295 = vsel %vm248, %v246, 0
  %v298 = vsel %vm248, %v247, 0
  %300 = vmatprep.subr.mxu0 0.0
  %301 = vmatpush1.xpose.msra.mxu0 %v253
  %302 = vmatprep.subr.mxu0 0.0
  %303 = vmatpush1.xpose.msra.mxu0 %v256
  %304 = vmatprep.subr.mxu0 0.0
  %305 = vmatpush1.xpose.msra.mxu0 %v259
  %306 = vmatprep.subr.mxu0 0.0
  %307 = vmatpush1.xpose.msra.mxu0 %v262
  %308 = vmatprep.subr.mxu0 0.0
  %309 = vmatpush1.xpose.msra.mxu0 %v265
  %310 = vmatprep.subr.mxu0 0.0
  %311 = vmatpush1.xpose.msra.mxu0 %v268
  %312 = vmatprep.subr.mxu0 0.0
  %313 = vmatpush1.xpose.msra.mxu0 %v271
  %314 = vmatprep.subr.mxu0 0.0
  %315 = vmatpush1.xpose.msra.mxu0 %v274
  %316 = vmatprep.subr.mxu0 0.0
  %317 = vmatpush1.xpose.msra.mxu0 %v277
  %318 = vmatprep.subr.mxu0 0.0
  %319 = vmatpush1.xpose.msra.mxu0 %v280
  %320 = vmatprep.subr.mxu0 0.0
  %321 = vmatpush1.xpose.msra.mxu0 %v283
  %322 = vmatprep.subr.mxu0 0.0
  %323 = vmatpush1.xpose.msra.mxu0 %v286
  %324 = vmatprep.subr.mxu0 0.0
  %325 = vmatpush1.xpose.msra.mxu0 %v289
  %326 = vmatprep.subr.mxu0 0.0
  %327 = vmatpush1.xpose.msra.mxu0 %v292
  %328 = vmatprep.subr.mxu0 0.0
  %329 = vmatpush1.xpose.msra.mxu0 %v295
  %330 = vmatprep.subr.mxu0 0.0
  %331 = vmatpush1.xpose.msra.mxu0 %v298
  %332 = vmatprep.subr.mxu0 0.0
  %333 = vmatpush1.xpose.msra.mxu0 0.0
  %334 = vmatprep.subr.mxu0 0.0
  %335 = vmatpush1.xpose.msra.mxu0 0.0
  %336 = vmatprep.subr.mxu0 0.0
  %337 = vmatpush1.xpose.msra.mxu0 0.0
  %338 = vmatprep.subr.mxu0 0.0
  %339 = vmatpush1.xpose.msra.mxu0 0.0
  %340 = vmatprep.subr.mxu0 0.0
  %341 = vmatpush1.xpose.msra.mxu0 0.0
  %342 = vmatprep.subr.mxu0 0.0
  %343 = vmatpush1.xpose.msra.mxu0 0.0
  %344 = vmatprep.subr.mxu0 0.0
  %345 = vmatpush1.xpose.msra.mxu0 0.0
  %346 = vmatprep.subr.mxu0 0.0
  %347 = vmatpush1.xpose.msra.mxu0 0.0
  %348 = vmatprep.subr.mxu0 0.0
  %349 = vmatpush1.xpose.msra.mxu0 0.0
  %350 = vmatprep.subr.mxu0 0.0
  %351 = vmatpush1.xpose.msra.mxu0 0.0
  %352 = vmatprep.subr.mxu0 0.0
  %353 = vmatpush1.xpose.msra.mxu0 0.0
  %354 = vmatprep.subr.mxu0 0.0
  %355 = vmatpush1.xpose.msra.mxu0 0.0
  %356 = vmatprep.subr.mxu0 0.0
  %357 = vmatpush1.xpose.msra.mxu0 0.0
  %358 = vmatprep.subr.mxu0 0.0
  %359 = vmatpush1.xpose.msra.mxu0 0.0
  %360 = vmatprep.subr.mxu0 0.0
  %361 = vmatpush1.xpose.msra.mxu0 0.0
  %362 = vmatprep.subr.mxu0 0.0
  %363 = vmatpush1.xpose.msra.mxu0 0.0
  %364 = vmatprep.mubr.f32.mxu0 0.0
  %365 = vmatmul.mubr.f32.gmra.mrb[0].mxu0 %v250
  %v366 = vpop.f32.mrb[0].mxu0
  %v367 = vadd.f32 0.0, %v366
  %v368 = vpop.f32.mrb[0].mxu0
  %369 = vdwg.mxu0
  %370 = vst [vmem:[%s3] sm:$0x1] %v367
  // Predicated region
  $region14: #{risan_forward.1} parent=0 // pred_check
    _
  $region15: #{risan_forward.1} parent=0 // pred_check_branch
    %372 = sbr.rel (0) target = $region17
  $region16: #{risan_forward.1} parent=0 // pred_region
    _
  $region17: #{risan_forward.1} parent=0 // pred_fallthru
    _
  // Predicated region
  $region18: #{risan_forward.1} parent=0 // pred_check
    _
  $region19: #{risan_forward.1} parent=0 // pred_check_branch
    %374 = sbr.rel (0) target = $region21
  $region20: #{risan_forward.1} parent=0 // pred_region
    _
  $region21: #{risan_forward.1} parent=0 // pred_fallthru
    _

</llo_original>
